<compile_context>
chip_gen: v7x
topology: tpu7x:2x2x1
jax: 0.10.0
libtpu: 0.0.40
codegen_flags: <defaults>
</compile_context>

<pallas_src>
import math

import jax
import jax.numpy as jnp
from jax.experimental import pallas as pl
from jax.experimental.pallas import tpu as pltpu


def _round_up(x, m):
    return (x + m - 1) // m * m


def _cdiv(a, b):
    return -(-a // b)


# --------------------------------------------------------------------------- #
# Kernel
# --------------------------------------------------------------------------- #
def ffn_kernel(x_ref, w1_ref, b1_ref, w2_ref, b2_ref, o_ref, acc_ref):
    # x_ref:  (tm, dm)   row tile of the input
    # w1_ref: (dm, tk)   column slab of W1
    # b1_ref: (1, tk)    matching slice of b1
    # w2_ref: (tk, dm)   row slab of W2
    # b2_ref: (1, dm)    full b2 (added once at finalize)
    # o_ref:  (tm, dm)   output row tile
    # acc_ref:(tm, dm)   f32 accumulator, resident across the k (d_ff) axis
    k = pl.program_id(1)

    # linear1 + bias + ReLU, in f32.
    h = jnp.dot(x_ref[...], w1_ref[...], preferred_element_type=jnp.float32)
    h = jnp.maximum(h + b1_ref[...], 0.0)

    # linear2 partial product for this d_ff slab.
    p = jnp.dot(h.astype(w2_ref.dtype), w2_ref[...],
                preferred_element_type=jnp.float32)

    @pl.when(k == 0)
    def _():
        acc_ref[...] = p            # first slab: write directly, no zero+add

    @pl.when(k != 0)
    def _():
        acc_ref[...] += p

    @pl.when(k == pl.num_programs(1) - 1)
    def _():
        o_ref[...] = (acc_ref[...] + b2_ref[...]).astype(o_ref.dtype)


# --------------------------------------------------------------------------- #
# Generation-aware planning
# --------------------------------------------------------------------------- #
def _hw_defaults():
    """(tm_target, vmem_budget_bytes, num_tensorcores) for the local chip."""
    vmem_cap = 64 << 20                      # conservative fallback (v7x per-TC)
    try:
        vmem_cap = int(pltpu.get_tpu_info().vmem_capacity_bytes)
    except Exception:
        pass
    kind = ""
    try:
        kind = jax.devices()[0].device_kind.lower()
    except Exception:
        pass
    if "v5" in kind:
        gen = "v5e"
    elif "v6" in kind:
        gen = "v6e"
    elif "7" in kind:
        gen = "v7x"
    else:
        gen = "v7x" if vmem_cap <= (80 << 20) else "v6e"

    if gen == "v5e":
        return 256, min(int(vmem_cap * 0.78), 100 << 20), 1
    if gen == "v6e":
        return 768, min(int(vmem_cap * 0.78), 100 << 20), 1
    # v7x: 64 MiB physical per TC; leave headroom for Mosaic internal scratch.
    return 512, min(int(vmem_cap * 0.78), 52 << 20), 2


def _k_tiling(d_ff, tk):
    """Spread d_ff padding across slabs: returns (tk_eff, n_k, dff_p)."""
    dff_128 = _round_up(d_ff, 128)
    n_k = _cdiv(dff_128, tk)
    tk_eff = _round_up(_cdiv(dff_128, n_k), 128)
    return tk_eff, n_k, tk_eff * n_k


def _vmem_footprint(tm, tk, dm_p, x_it, w_it, o_it, nbuf_w):
    io = 2 * tm * dm_p * (x_it + o_it)                       # x / out, 2-deep
    wgt = nbuf_w * (2 * dm_p * tk + tk + dm_p) * w_it        # W1, W2 slabs, b1, b2
    acc = tm * dm_p * 4                                      # f32 accumulator
    temps = tm * tk * (4 + w_it) + tm * dm_p * 4             # h (f32 + cast) + p
    return io + wgt + acc + temps


def _plan(M, d_model, d_ff, x_dtype, w_dtype, out_dtype, tm, tk, fixed_k=None):
    tm_target, vmem_budget, num_tc = _hw_defaults()
    if tm is None:
        tm = tm_target
    if tk is None:
        tk = 512
    assert tm % 8 == 0 and tk % 128 == 0

    dm_p = _round_up(d_model, 128)
    if fixed_k is None:
        tk_eff, n_k, dff_p = _k_tiling(d_ff, tk)
    else:
        tk_eff, n_k, dff_p = fixed_k

    x_it = jnp.dtype(x_dtype).itemsize
    w_it = jnp.dtype(w_dtype).itemsize
    o_it = jnp.dtype(out_dtype).itemsize

    tm_eff = min(tm, _round_up(M, 8))
    # v7x: 2 TensorCores share the "parallel" row axis -- ensure both get work.
    if num_tc == 2 and _round_up(M, tm_eff) // tm_eff < 2 and M > 8:
        tm_eff = _round_up(_cdiv(M, 2), 8)

    # Shrink tm (then tk, unless the weight layout is fixed) until the honest
    # footprint -- including the h temporaries -- fits the budget.
    while (_vmem_footprint(tm_eff, tk_eff, dm_p, x_it, w_it, o_it, 2)
           > vmem_budget and tm_eff > 8):
        tm_eff = max(8, _round_up(tm_eff // 2, 8))
    if fixed_k is None:
        while (_vmem_footprint(tm_eff, tk_eff, dm_p, x_it, w_it, o_it, 2)
               > vmem_budget and tk_eff > 128):
            tk_eff = max(128, _round_up(tk_eff // 2, 128))
            dff_128 = _round_up(d_ff, 128)
            n_k = _cdiv(dff_128, tk_eff)
            dff_p = n_k * tk_eff

    m_p = _round_up(M, tm_eff)
    grid_i = m_p // tm_eff

    # Decode / small-M regime: weights stream exactly once and the kernel is
    # HBM-bound -> deepen the weight pipeline when slabs are big and it fits.
    nbuf_w = 2
    slab_bytes = dm_p * tk_eff * w_it
    if (grid_i == 1 and n_k >= 3 and slab_bytes >= (1 << 20)
            and _vmem_footprint(tm_eff, tk_eff, dm_p, x_it, w_it, o_it, 3)
            <= vmem_budget):
        nbuf_w = 3

    footprint = _vmem_footprint(tm_eff, tk_eff, dm_p, x_it, w_it, o_it, nbuf_w)
    vmem_limit = int(min(max(footprint + (4 << 20), 16 << 20),
                         max(vmem_budget, 16 << 20)))

    return dict(dm_p=dm_p, dff_p=dff_p, tk_eff=tk_eff, n_k=n_k,
                tm_eff=tm_eff, m_p=m_p, grid_i=grid_i, nbuf_w=nbuf_w,
                vmem_limit=vmem_limit)


# --------------------------------------------------------------------------- #
# pallas_call wrapper
# --------------------------------------------------------------------------- #
def _maybe_pad(a, target_shape):
    pads = tuple((0, t - s) for s, t in zip(a.shape, target_shape))
    if all(p == (0, 0) for p in pads):
        return a                    # skip jnp.pad entirely for aligned shapes
    return jnp.pad(a, pads)


def _ffn_call(xp, w1p, b1p, w2p, b2p, plan, out_dtype, M, d_model, d_ff):
    tm, tk, dm_p = plan["tm_eff"], plan["tk_eff"], plan["dm_p"]
    grid = (plan["grid_i"], plan["n_k"])

    # Triple-buffered weight streaming for the HBM-bound decode regime.
    w_mode = pl.Buffered(plan["nbuf_w"]) if plan["nbuf_w"] != 2 else None

    def wspec(shape, index_map):
        if w_mode is None:
            return pl.BlockSpec(shape, index_map)
        return pl.BlockSpec(shape, index_map, pipeline_mode=w_mode)

    x_it = jnp.dtype(xp.dtype).itemsize
    w_it = jnp.dtype(w1p.dtype).itemsize
    o_it = jnp.dtype(out_dtype).itemsize
    cost = pl.CostEstimate(
        flops=4 * M * d_model * d_ff,
        transcendentals=0,
        # W1/W2 are re-streamed once per row tile.
        bytes_accessed=(M * d_model * x_it
                        + plan["grid_i"]
                        * (w1p.size + w2p.size + b1p.size + b2p.size) * w_it
                        + M * d_model * o_it),
    )

    return pl.pallas_call(
        ffn_kernel,
        out_shape=jax.ShapeDtypeStruct((plan["m_p"], dm_p), out_dtype),
        grid_spec=pltpu.PrefetchScalarGridSpec(
            num_scalar_prefetch=0,
            grid=grid,
            in_specs=[
                pl.BlockSpec((tm, dm_p), lambda i, k: (i, 0)),   # x rows
                wspec((dm_p, tk), lambda i, k: (0, k)),          # W1 slab
                pl.BlockSpec((1, tk), lambda i, k: (0, k)),      # b1 slice
                wspec((tk, dm_p), lambda i, k: (k, 0)),          # W2 slab
                pl.BlockSpec((1, dm_p), lambda i, k: (0, 0)),    # b2 (full)
            ],
            out_specs=pl.BlockSpec((tm, dm_p), lambda i, k: (i, 0)),
            scratch_shapes=[pltpu.VMEM((tm, dm_p), jnp.float32)],
        ),
        compiler_params=pltpu.CompilerParams(
            dimension_semantics=("parallel", "arbitrary"),
            vmem_limit_bytes=plan["vmem_limit"],
        ),
        cost_estimate=cost,
    )(xp, w1p, b1p, w2p, b2p)


def feed_forward(x, w1, b1, w2, b2, *, tm=None, tk=None):
    """relu(x @ W1 + b1) @ W2 + b2 applied over the last axis of x.

    x : (..., d_model); w1: (d_model, d_ff); b1: (d_ff,)
    w2: (d_ff, d_model); b2: (d_model,)
    tm/tk default to generation-aware values (see _hw_defaults).
    """
    orig_shape = x.shape
    d_model = orig_shape[-1]
    d_ff = w1.shape[1]
    x2d = x.reshape(-1, d_model)
    M = x2d.shape[0]

    plan = _plan(M, d_model, d_ff, x.dtype, w1.dtype, x.dtype, tm, tk)

    # Zero-padding is numerically exact for this FFN (relu(0)=0, zero W2 rows).
    xp = _maybe_pad(x2d, (plan["m_p"], plan["dm_p"]))
    w1p = _maybe_pad(w1, (plan["dm_p"], plan["dff_p"]))
    b1p = _maybe_pad(b1.reshape(1, -1), (1, plan["dff_p"]))
    w2p = _maybe_pad(w2, (plan["dff_p"], plan["dm_p"]))
    b2p = _maybe_pad(b2.reshape(1, -1), (1, plan["dm_p"]))

    out_p = _ffn_call(xp, w1p, b1p, w2p, b2p, plan, x.dtype, M, d_model, d_ff)
    return out_p[:M, :d_model].reshape(orig_shape)


def make_feed_forward(w1, b1, w2, b2, *, tm=None, tk=None):
    """Hoists weight padding out of the per-call path: pads W1/b1/W2/b2 once
    and returns fn(x) that only pads/reshapes the activations each call."""
    d_model, d_ff = w1.shape
    fixed_k = _k_tiling(d_ff, tk if tk is not None else 512)
    tk_eff, _, dff_p = fixed_k
    dm_p = _round_up(d_model, 128)

    w1p = _maybe_pad(w1, (dm_p, dff_p))
    b1p = _maybe_pad(b1.reshape(1, -1), (1, dff_p))
    w2p = _maybe_pad(w2, (dff_p, dm_p))
    b2p = _maybe_pad(b2.reshape(1, -1), (1, dm_p))

    def fn(x):
        orig_shape = x.shape
        x2d = x.reshape(-1, d_model)
        M = x2d.shape[0]
        plan = _plan(M, d_model, d_ff, x.dtype, w1.dtype, x.dtype,
                     tm, tk_eff, fixed_k=fixed_k)
        xp = _maybe_pad(x2d, (plan["m_p"], plan["dm_p"]))
        out_p = _ffn_call(xp, w1p, b1p, w2p, b2p, plan, x.dtype,
                          M, d_model, d_ff)
        return out_p[:M, :d_model].reshape(orig_shape)

    return fn


# --------------------------------------------------------------------------- #
# Params / reference / tests
# --------------------------------------------------------------------------- #
def init_params(key, d_model, d_ff, dtype=jnp.float32):
    """Deterministic init matching nn.Linear's U(-1/sqrt(fan_in), 1/sqrt(fan_in))."""
    k1, k2, k3, k4 = jax.random.split(key, 4)
    bound1 = 1.0 / math.sqrt(d_model)
    bound2 = 1.0 / math.sqrt(d_ff)
    # stored as [in, out] (transpose of PyTorch's [out, in])
    w1 = jax.random.uniform(k1, (d_model, d_ff), dtype, -bound1, bound1)
    b1 = jax.random.uniform(k2, (d_ff,), dtype, -bound1, bound1)
    w2 = jax.random.uniform(k3, (d_ff, d_model), dtype, -bound2, bound2)
    b2 = jax.random.uniform(k4, (d_model,), dtype, -bound2, bound2)
    return w1, b1, w2, b2


def _ref_ffn(x, w1, b1, w2, b2):
    return jnp.maximum(x @ w1 + b1, 0.0) @ w2 + b2


if __name__ == "__main__":
    key = jax.random.PRNGKey(0)

    # Primary small test (module-consistent shapes): batch=2, seq=8, d_model=32, d_ff=64.
    batch, seq, d_model, d_ff = 2, 8, 32, 64
    kx, kp, kx2, kp2 = jax.random.split(key, 4)
    x = jax.random.normal(kx, (batch, seq, d_model), jnp.float32)
    w1, b1, w2, b2 = init_params(kp, d_model, d_ff)

    out = feed_forward(x, w1, b1, w2, b2)
    out = jax.block_until_ready(out)
    ref = _ref_ffn(x, w1, b1, w2, b2)
    assert out.shape == (batch, seq, d_model)
    assert jnp.allclose(out, ref, atol=1e-5, rtol=1e-5)

    # Second test: multi-step d_ff reduction + padding path (d_ff=300, tk=128).
    d_ff2 = 300
    x2 = jax.random.normal(kx2, (batch, seq, d_model), jnp.float32)
    w1b, b1b, w2b, b2b = init_params(kp2, d_model, d_ff2)
    out2 = feed_forward(x2, w1b, b1b, w2b, b2b, tm=16, tk=128)
    out2 = jax.block_until_ready(out2)
    ref2 = _ref_ffn(x2, w1b, b1b, w2b, b2b)
    assert jnp.allclose(out2, ref2, atol=1e-5, rtol=1e-5)

    # Third test: pre-padded-weight path (padding hoisted out of the call).
    ffn = make_feed_forward(w1b, b1b, w2b, b2b, tk=128)
    out3 = jax.block_until_ready(ffn(x2))
    assert jnp.allclose(out3, ref2, atol=1e-5, rtol=1e-5)

    print("KERNEL_OK")
</pallas_src>

<mosaic_0001>
module attributes {stable_mosaic.version = 11 : i64} {
  func.func @ffn_kernel(%arg0: i32, %arg1: i32, %arg2: memref<8x128xf32, #tpu.memory_space<vmem>>, %arg3: memref<128x128xf32, #tpu.memory_space<vmem>>, %arg4: memref<1x128xf32, #tpu.memory_space<vmem>>, %arg5: memref<128x128xf32, #tpu.memory_space<vmem>>, %arg6: memref<1x128xf32, #tpu.memory_space<vmem>>, %arg7: memref<8x128xf32, #tpu.memory_space<vmem>>, %arg8: memref<8x128xf32, #tpu.memory_space<vmem>>) attributes {dimension_semantics = [#tpu.dimension_semantics<parallel>, #tpu.dimension_semantics<arbitrary>], iteration_bounds = array<i64: 2, 1>, scalar_prefetch = 0 : i64, scratch_operands = 1 : i64, tpu.core_type = #tpu.core_type<tc>, window_params = [{transform_indices = @transform_0, window_bounds = array<i64: 8, 128>}, {transform_indices = @transform_1, window_bounds = array<i64: 128, 128>}, {transform_indices = @transform_2, window_bounds = array<i64: 1, 128>}, {transform_indices = @transform_3, window_bounds = array<i64: 128, 128>}, {pipeline_mode = #tpu.pipeline_mode<synchronous>, transform_indices = @transform_4, window_bounds = array<i64: 1, 128>}, {transform_indices = @transform_5, window_bounds = array<i64: 8, 128>}]} {
    %c0 = arith.constant 0 : index
    %c0_0 = arith.constant 0 : index
    %0 = vector.load %arg2[%c0, %c0_0] : memref<8x128xf32, #tpu.memory_space<vmem>>, vector<8x128xf32>
    %c0_1 = arith.constant 0 : index
    %c0_2 = arith.constant 0 : index
    %1 = vector.load %arg3[%c0_1, %c0_2] : memref<128x128xf32, #tpu.memory_space<vmem>>, vector<128x128xf32>
    %cst = arith.constant dense<0.000000e+00> : vector<8x128xf32>
    %2 = tpu.matmul %0, %1, %cst {dimension_numbers = #tpu.dot_dimension_numbers<[1], [0], [0], [1], [0, 0, 1, 1], [], []>} : vector<8x128xf32>, vector<128x128xf32>, vector<8x128xf32> -> vector<8x128xf32>
    %c0_3 = arith.constant 0 : index
    %c0_4 = arith.constant 0 : index
    %3 = vector.load %arg4[%c0_3, %c0_4] : memref<1x128xf32, #tpu.memory_space<vmem>>, vector<1x128xf32>
    %4 = vector.broadcast %3 : vector<1x128xf32> to vector<8x128xf32>
    %5 = arith.addf %2, %4 : vector<8x128xf32>
    %cst_5 = arith.constant 0.000000e+00 : f32
    %6 = vector.broadcast %cst_5 : f32 to vector<8x128xf32>
    %7 = arith.maximumf %5, %6 : vector<8x128xf32>
    %c0_6 = arith.constant 0 : index
    %c0_7 = arith.constant 0 : index
    %8 = vector.load %arg5[%c0_6, %c0_7] : memref<128x128xf32, #tpu.memory_space<vmem>>, vector<128x128xf32>
    %cst_8 = arith.constant dense<0.000000e+00> : vector<8x128xf32>
    %9 = tpu.matmul %7, %8, %cst_8 {dimension_numbers = #tpu.dot_dimension_numbers<[1], [0], [0], [1], [0, 0, 1, 1], [], []>} : vector<8x128xf32>, vector<128x128xf32>, vector<8x128xf32> -> vector<8x128xf32>
    %c0_i32 = arith.constant 0 : i32
    %10 = arith.cmpi eq, %arg1, %c0_i32 : i32
    %11 = arith.extui %10 : i1 to i32
    %c0_i32_9 = arith.constant 0 : i32
    %12 = arith.cmpi ne, %11, %c0_i32_9 : i32
    scf.if %12 {
      %c0_14 = arith.constant 0 : index
      %c0_15 = arith.constant 0 : index
      %19 = vector.load %arg8[%c0_14, %c0_15] : memref<8x128xf32, #tpu.memory_space<vmem>>, vector<8x128xf32>
      tpu.vector_store %arg8[%c0_14, %c0_15], %9 {strides = array<i32>} : memref<8x128xf32, #tpu.memory_space<vmem>>, vector<8x128xf32>,
    } else {
    }
    %c0_i32_10 = arith.constant 0 : i32
    %13 = arith.cmpi ne, %arg1, %c0_i32_10 : i32
    %14 = arith.extui %13 : i1 to i32
    %c0_i32_11 = arith.constant 0 : i32
    %15 = arith.cmpi ne, %14, %c0_i32_11 : i32
    scf.if %15 {
      %c0_14 = arith.constant 0 : index
      %c0_15 = arith.constant 0 : index
      %19 = vector.load %arg8[%c0_14, %c0_15] : memref<8x128xf32, #tpu.memory_space<vmem>>, vector<8x128xf32>
      %20 = arith.addf %19, %9 : vector<8x128xf32>
      %c0_16 = arith.constant 0 : index
      %c0_17 = arith.constant 0 : index
      %21 = vector.load %arg8[%c0_16, %c0_17] : memref<8x128xf32, #tpu.memory_space<vmem>>, vector<8x128xf32>
      tpu.vector_store %arg8[%c0_16, %c0_17], %20 {strides = array<i32>} : memref<8x128xf32, #tpu.memory_space<vmem>>, vector<8x128xf32>,
    } else {
    }
    %c0_i32_12 = arith.constant 0 : i32
    %16 = arith.cmpi eq, %arg1, %c0_i32_12 : i32
    %17 = arith.extui %16 : i1 to i32
    %c0_i32_13 = arith.constant 0 : i32
    %18 = arith.cmpi ne, %17, %c0_i32_13 : i32
    scf.if %18 {
      %c0_14 = arith.constant 0 : index
      %c0_15 = arith.constant 0 : index
      %19 = vector.load %arg8[%c0_14, %c0_15] : memref<8x128xf32, #tpu.memory_space<vmem>>, vector<8x128xf32>
      %c0_16 = arith.constant 0 : index
      %c0_17 = arith.constant 0 : index
      %20 = vector.load %arg6[%c0_16, %c0_17] : memref<1x128xf32, #tpu.memory_space<vmem>>, vector<1x128xf32>
      %21 = vector.broadcast %20 : vector<1x128xf32> to vector<8x128xf32>
      %22 = arith.addf %19, %21 : vector<8x128xf32>
      %c0_18 = arith.constant 0 : index
      %c0_19 = arith.constant 0 : index
      %23 = vector.load %arg7[%c0_18, %c0_19] : memref<8x128xf32, #tpu.memory_space<vmem>>, vector<8x128xf32>
      tpu.vector_store %arg7[%c0_18, %c0_19], %22 {strides = array<i32>} : memref<8x128xf32, #tpu.memory_space<vmem>>, vector<8x128xf32>,
    } else {
    }
    return
  }
  func.func @transform_0(%arg0: i32, %arg1: i32) -> (i32, i32) {
    %c0_i32 = arith.constant 0 : i32
    %c0_i32_0 = arith.constant 0 : i32
    return %arg0, %c0_i32 : i32, i32
  }
  func.func @transform_1(%arg0: i32, %arg1: i32) -> (i32, i32) {
    %c0_i32 = arith.constant 0 : i32
    %c0_i32_0 = arith.constant 0 : i32
    return %c0_i32, %arg1 : i32, i32
  }
  func.func @transform_2(%arg0: i32, %arg1: i32) -> (i32, i32) {
    %c0_i32 = arith.constant 0 : i32
    %c0_i32_0 = arith.constant 0 : i32
    return %c0_i32, %arg1 : i32, i32
  }
  func.func @transform_3(%arg0: i32, %arg1: i32) -> (i32, i32) {
    %c0_i32 = arith.constant 0 : i32
    %c0_i32_0 = arith.constant 0 : i32
    return %arg1, %c0_i32 : i32, i32
  }
  func.func @transform_4(%arg0: i32, %arg1: i32) -> (i32, i32) {
    %c0_i32 = arith.constant 0 : i32
    %c0_i32_0 = arith.constant 0 : i32
    %c0_i32_1 = arith.constant 0 : i32
    return %c0_i32, %c0_i32_0 : i32, i32
  }
  func.func @transform_5(%arg0: i32, %arg1: i32) -> (i32, i32) {
    %c0_i32 = arith.constant 0 : i32
    %c0_i32_0 = arith.constant 0 : i32
    return %arg0, %c0_i32 : i32, i32
  }
}

</mosaic_0001>

<llo_original>
// kernel: tpu_custom_call.1
$region0: #{tpu_custom_call.1}
  #allocation0 [shape = 'u32[]', space=smem, size = 0x4, offset = 0x4, fixed_abs, tag = 'smem constant byte address 0x4 - core index']
  #allocation1 [shape = 'u32[144,128]{1,0:T(1,128)}', space=vmem, size = 0x12000, scoped, tag = 'internal scratch']
  #allocation2 [shape = 'f32[8,128]{1,0:T(8,128)}', space=vmem, size = 0x1000, scoped, tag = 'scratch operand']
  %s0 = inlined_call_operand.hbm [shape: f32[16,128], index: 0, kind: input, shape index: {}]
  %s1 = inlined_call_operand.hbm [shape: f32[128,128], index: 1, kind: input, shape index: {}]
  %s2 = inlined_call_operand.vmem [shape: f32[1,128], index: 2, kind: input, shape index: {}]
  %s3 = inlined_call_operand.hbm [shape: f32[128,128], index: 3, kind: input, shape index: {}]
  %s4 = inlined_call_operand.vmem [shape: f32[1,128], index: 4, kind: input, shape index: {}]
  %s5 = inlined_call_operand.hbm [shape: f32[16,128], index: 5, kind: output, shape index: {}]
  %s6 = sld [smem:[#allocation0]]
  $region77: #{tpu_custom_call.1} parent=0
    _
  %s8 = ssub.s32 1, %s6
  %s9 = scalar_select 0, %s8, %s6
  $region1: #{tpu_custom_call.1} parent=0
    #allocation3 [shape = 'u8[8192]{0}', space=vmem, size = 0x2000, scoped, tag = 'input window, operand 0']
    #allocation4 [shape = 's32[2]{0}', space=sflag, size = 0x8, scoped, tag = 'scoped memory for tpu_custom_call.1']
    #allocation5 [shape = 's32[2]{0}', space=sflag, size = 0x8, scoped, tag = 'scoped memory for tpu_custom_call.1']
    #allocation6 [shape = 'u8[65536]{0}', space=vmem, size = 0x10000, scoped, tag = 'input window, operand 1, single buffered']
    #allocation7 [shape = 's32[1]{0}', space=sflag, size = 0x4, scoped, tag = 'scoped memory for tpu_custom_call.1']
    #allocation8 [shape = 'u8[65536]{0}', space=vmem, size = 0x10000, scoped, tag = 'input window, operand 3, single buffered']
    #allocation9 [shape = 'u8[8192]{0}', space=vmem, size = 0x2000, scoped, tag = 'output window, operand 0']
    %10 = vsyncpa [#allocation4], 0
    %s11 = scalar_lea.sflag [#allocation4], 1
    %12 = vsyncpa %s11, 0
    %13 = vsyncpa [#allocation7], 0
    %14 = vsyncpa [#allocation5], 0
    %s15 = scalar_lea.sflag [#allocation5], 1
    %16 = vsyncpa %s15, 0
    loop: start=0, step=1, limit=4
    $region2: #{tpu_custom_call.1} parent=1 // loop_pre_header
      _
    $region3: #{tpu_custom_call.1} parent=1 // loop_header
      %s18 = sphi 0, %s22
      %p19 = scmp.ge.s32.totalorder %s18, 4
      %s25 = sphi 0, %s37
      %s26 = sphi 0, %s33
      %s27 = sphi 0, %s25
      %s28 = sphi 0, %s26
      %s29 = sphi 0, %s27
      %s30 = sphi 0, %s28
      %s40 = sphi 0, %s42
      %s43 = sphi 0, %s40
      %s44 = sphi 0, %s43
      %s60 = sphi 0, %s44
      %s66 = sphi 0, %s68
      %s69 = sphi 0, %s66
      %s70 = sphi 0, %s69
      %s86 = sphi 0, %s70
      %s92 = sphi 0, %s94
      %s95 = sphi 0, %s92
      %s96 = sphi 0, %s95
      %s112 = sphi 0, %s96
      %s118 = sphi 0, %s120
      %s121 = sphi 0, %s118
      %s122 = sphi 0, %s121
      %s138 = sphi 0, %s122
      %s142 = sphi 0, %s142
      %s144 = sphi 0, %s142
      %s145 = sphi 0, %s144
      %s159 = sphi 0, %s145
      %s165 = sphi 0, %s167
      %s168 = sphi 0, %s165
      %s169 = sphi 0, %s168
      %s185 = sphi 0, %s169
    $region4: #{tpu_custom_call.1} parent=1 // loop_header_branch
      %21 = sbr.rel (%p19) target = $region8
    $region5: #{tpu_custom_call.1} parent=1 // loop_body
      %s23 = ssub.s32 %s18, 1
      %s24 = ssub.s32 %s18, 2
      %s31 = sadd.s32 1, %s26
      %p32 = scmp.ge.s32.totalorder %s31, 1
      %s33 = scalar_select %p32, 0, %s31
      %s34 = sadd.s32 1, %s25
      %s35 = scalar_select %p32, %s34, %s25
      %p36 = scmp.ge.s32.totalorder %s35, 2
      %s37 = scalar_select %p36, 0, %s35
      %s38 = ssub.s32 %s25, %s37
      %p39 = scmp.eq.s32.totalorder %s38, 0
      %s41 = sadd.s32 %s40, 1
      %s42 = scalar_select %p39, %s40, %s41
      %p45 = pneg %p39
      %p46 = scmp.eq.s32.totalorder %s18, 1
      %p47 = por %p45, %p46
      %p48 = scmp.ne.s32.totalorder %s40, %s43
      %p49 = scmp.eq.s32.totalorder %s18, 0
      %p50 = por %p48, %p49
      %p51 = scmp.ne.s32.totalorder %s40, %s43
      %p52 = scmp.eq.s32.totalorder %s23, 1
      %p53 = por %p51, %p52
      %p54 = scmp.ne.s32.totalorder %s43, %s44
      %p55 = scmp.eq.s32.totalorder %s23, 0
      %p56 = por %p54, %p55
      %p57 = scmp.ne.s32.totalorder %s43, %s44
      %p58 = scmp.eq.s32.totalorder %s24, 1
      %p59 = por %p57, %p58
      %p61 = scmp.ne.s32.totalorder %s44, %s60
      %p62 = scmp.eq.s32.totalorder %s24, 0
      %p63 = por %p61, %p62
      %s64 = ssub.s32 %s26, %s33
      %p65 = scmp.eq.s32.totalorder %s64, 0
      %s67 = sadd.s32 %s66, 1
      %s68 = scalar_select %p65, %s66, %s67
      %p71 = pneg %p65
      %p72 = scmp.eq.s32.totalorder %s18, 1
      %p73 = por %p71, %p72
      %p74 = scmp.ne.s32.totalorder %s66, %s69
      %p75 = scmp.eq.s32.totalorder %s18, 0
      %p76 = por %p74, %p75
      %p77 = scmp.ne.s32.totalorder %s66, %s69
      %p78 = scmp.eq.s32.totalorder %s23, 1
      %p79 = por %p77, %p78
      %p80 = scmp.ne.s32.totalorder %s69, %s70
      %p81 = scmp.eq.s32.totalorder %s23, 0
      %p82 = por %p80, %p81
      %p83 = scmp.ne.s32.totalorder %s69, %s70
      %p84 = scmp.eq.s32.totalorder %s24, 1
      %p85 = por %p83, %p84
      %p87 = scmp.ne.s32.totalorder %s70, %s86
      %p88 = scmp.eq.s32.totalorder %s24, 0
      %p89 = por %p87, %p88
      %s90 = ssub.s32 %s26, %s33
      %p91 = scmp.eq.s32.totalorder %s90, 0
      %s93 = sadd.s32 %s92, 1
      %s94 = scalar_select %p91, %s92, %s93
      %p97 = pneg %p91
      %p98 = scmp.eq.s32.totalorder %s18, 1
      %p99 = por %p97, %p98
      %p100 = scmp.ne.s32.totalorder %s92, %s95
      %p101 = scmp.eq.s32.totalorder %s18, 0
      %p102 = por %p100, %p101
      %p103 = scmp.ne.s32.totalorder %s92, %s95
      %p104 = scmp.eq.s32.totalorder %s23, 1
      %p105 = por %p103, %p104
      %p106 = scmp.ne.s32.totalorder %s95, %s96
      %p107 = scmp.eq.s32.totalorder %s23, 0
      %p108 = por %p106, %p107
      %p109 = scmp.ne.s32.totalorder %s95, %s96
      %p110 = scmp.eq.s32.totalorder %s24, 1
      %p111 = por %p109, %p110
      %p113 = scmp.ne.s32.totalorder %s96, %s112
      %p114 = scmp.eq.s32.totalorder %s24, 0
      %p115 = por %p113, %p114
      %s116 = ssub.s32 %s26, %s33
      %p117 = scmp.eq.s32.totalorder %s116, 0
      %s119 = sadd.s32 %s118, 1
      %s120 = scalar_select %p117, %s118, %s119
      %p123 = pneg %p117
      %p124 = scmp.eq.s32.totalorder %s18, 1
      %p125 = por %p123, %p124
      %p126 = scmp.ne.s32.totalorder %s118, %s121
      %p127 = scmp.eq.s32.totalorder %s18, 0
      %p128 = por %p126, %p127
      %p129 = scmp.ne.s32.totalorder %s118, %s121
      %p130 = scmp.eq.s32.totalorder %s23, 1
      %p131 = por %p129, %p130
      %p132 = scmp.ne.s32.totalorder %s121, %s122
      %p133 = scmp.eq.s32.totalorder %s23, 0
      %p134 = por %p132, %p133
      %p135 = scmp.ne.s32.totalorder %s121, %s122
      %p136 = scmp.eq.s32.totalorder %s24, 1
      %p137 = por %p135, %p136
      %p139 = scmp.ne.s32.totalorder %s122, %s138
      %p140 = scmp.eq.s32.totalorder %s24, 0
      %p141 = por %p139, %p140
      %s143 = sadd.s32 %s142, 1
      %p146 = scmp.eq.s32.totalorder %s18, 1
      %p147 = scmp.ne.s32.totalorder %s142, %s144
      %p148 = scmp.eq.s32.totalorder %s18, 0
      %p149 = por %p147, %p148
      %p150 = scmp.ne.s32.totalorder %s142, %s144
      %p151 = scmp.eq.s32.totalorder %s23, 1
      %p152 = por %p150, %p151
      %p153 = scmp.ne.s32.totalorder %s144, %s145
      %p154 = scmp.eq.s32.totalorder %s23, 0
      %p155 = por %p153, %p154
      %p156 = scmp.ne.s32.totalorder %s144, %s145
      %p157 = scmp.eq.s32.totalorder %s24, 1
      %p158 = por %p156, %p157
      %p160 = scmp.ne.s32.totalorder %s145, %s159
      %p161 = scmp.eq.s32.totalorder %s24, 0
      %p162 = por %p160, %p161
      %s163 = ssub.s32 %s25, %s37
      %p164 = scmp.eq.s32.totalorder %s163, 0
      %s166 = sadd.s32 %s165, 1
      %s167 = scalar_select %p164, %s165, %s166
      %p170 = pneg %p164
      %p171 = scmp.eq.s32.totalorder %s18, 1
      %p172 = por %p170, %p171
      %p173 = scmp.ne.s32.totalorder %s165, %s168
      %p174 = scmp.eq.s32.totalorder %s18, 0
      %p175 = por %p173, %p174
      %p176 = scmp.ne.s32.totalorder %s165, %s168
      %p177 = scmp.eq.s32.totalorder %s23, 1
      %p178 = por %p176, %p177
      %p179 = scmp.ne.s32.totalorder %s168, %s169
      %p180 = scmp.eq.s32.totalorder %s23, 0
      %p181 = por %p179, %p180
      %p182 = scmp.ne.s32.totalorder %s168, %s169
      %p183 = scmp.eq.s32.totalorder %s24, 1
      %p184 = por %p182, %p183
      %p186 = scmp.ne.s32.totalorder %s169, %s185
      %p187 = scmp.eq.s32.totalorder %s24, 0
      %p188 = por %p186, %p187
      %p189 = scmp.le.s32.totalorder 1, %s18
      %p190 = scmp.lt.s32.totalorder %s18, 3
      %p191 = pnand %p189, %p190
      %p192 = pneg %p191
      // Predicated region
      $region9: #{tpu_custom_call.1} parent=5 // pred_check
        _
      $region10: #{tpu_custom_call.1} parent=5 // pred_check_branch
        %194 = sbr.rel (%p191) target = $region12
      $region11: #{tpu_custom_call.1} parent=5 // pred_region
        %s195 = ssub.s32 %s18, 1
        // Predicated region
        $region13: #{tpu_custom_call.1} parent=11 // pred_check
          %p196 = pneg %p82
        $region14: #{tpu_custom_call.1} parent=11 // pred_check_branch
          %198 = sbr.rel (%p196) target = $region16
        $region15: #{tpu_custom_call.1} parent=11 // pred_region
          %s200 = ssub.s32 2048, 2048
          %201 = vsyncadd [#allocation7], %s200
          %s202 = smul.addr %s28, 128
          %s203 = scalar_lea.hbm %s1, %s202
          %s204 = sshll.u32 [#allocation6], 4
          %s205 = int_to_ptr.vmem [resolvable:$true] %s204
          %210 = dma.hbm_to_vmem [thread:$0]  %s203, 2048, %s205, [#allocation7], 128, 128, 8
        $region16: #{tpu_custom_call.1} parent=11 // pred_fallthru
          _
        // Predicated region
        $region17: #{tpu_custom_call.1} parent=11 // pred_check
          %p211 = pneg %p108
        $region18: #{tpu_custom_call.1} parent=11 // pred_check_branch
          %213 = sbr.rel (%p211) target = $region20
        $region19: #{tpu_custom_call.1} parent=11 // pred_region
          %p214 = scmp.lt.s32.totalorder %s28, 0
          %s215 = scalar_select %p214, %s28, 0
          %s216 = scalar_lea.vmem %s2, %s215
        $region20: #{tpu_custom_call.1} parent=11 // pred_fallthru
          _
        // Predicated region
        $region21: #{tpu_custom_call.1} parent=11 // pred_check
          %p217 = pneg %p134
        $region22: #{tpu_custom_call.1} parent=11 // pred_check_branch
          %219 = sbr.rel (%p217) target = $region24
        $region23: #{tpu_custom_call.1} parent=11 // pred_region
          %s220 = smul.u32 16, %s28
          %s222 = ssub.s32 2048, 2048
          %223 = vsyncadd [#allocation7], %s222
          %s224 = smul.addr %s220, 128
          %s225 = scalar_lea.hbm %s3, %s224
          %s226 = sshll.u32 [#allocation8], 4
          %s227 = int_to_ptr.vmem [resolvable:$true] %s226
          %232 = dma.hbm_to_vmem [thread:$0]  %s225, 2048, %s227, [#allocation7], 128, 128, 8
        $region24: #{tpu_custom_call.1} parent=11 // pred_fallthru
          _
        // Predicated region
        $region25: #{tpu_custom_call.1} parent=11 // pred_check
          %p233 = pneg %p155
        $region26: #{tpu_custom_call.1} parent=11 // pred_check_branch
          %235 = sbr.rel (%p233) target = $region28
        $region27: #{tpu_custom_call.1} parent=11 // pred_region
          _
        $region28: #{tpu_custom_call.1} parent=11 // pred_fallthru
          _
      $region12: #{tpu_custom_call.1} parent=5 // pred_fallthru
        _
      %p236 = scmp.lt.s32.totalorder %s18, 2
      // Predicated region
      $region29: #{tpu_custom_call.1} parent=5 // pred_check
        %p237 = pneg %p236
      $region30: #{tpu_custom_call.1} parent=5 // pred_check_branch
        %239 = sbr.rel (%p237) target = $region32
      $region31: #{tpu_custom_call.1} parent=5 // pred_region
        // Predicated region
        $region33: #{tpu_custom_call.1} parent=31 // pred_check
          %p240 = pneg %p50
        $region34: #{tpu_custom_call.1} parent=31 // pred_check_branch
          %242 = sbr.rel (%p240) target = $region36
        $region35: #{tpu_custom_call.1} parent=31 // pred_region
          %s243 = sand.u32 %s40, 1
          %s244 = scalar_lea.sflag [#allocation4], %s243
          %s245 = sand.u32 %s40, 1
          %s246 = smul.addr %s245, 8
          %s247 = scalar_lea.vmem [#allocation3], %s246
          %s249 = ssub.s32 128, 128
          %250 = vsyncadd %s244, %s249
          %s251 = smul.addr %s25, 128
          %s252 = scalar_lea.hbm %s0, %s251
          %s254 = sshll.u32 %s247, 4
          %s255 = int_to_ptr.vmem [resolvable:$true] %s254
          %257 = dma.hbm_to_vmem [thread:$0]  %s252, 128, %s255, %s244
        $region36: #{tpu_custom_call.1} parent=31 // pred_fallthru
          _
      $region32: #{tpu_custom_call.1} parent=5 // pred_fallthru
        _
      %p258 = scmp.le.s32.totalorder 1, %s18
      %p259 = scmp.lt.s32.totalorder %s18, 3
      %p260 = pnand %p258, %p259
      %p261 = pneg %p260
      // Predicated region
      $region37: #{tpu_custom_call.1} parent=5 // pred_check
        _
      $region38: #{tpu_custom_call.1} parent=5 // pred_check_branch
        %263 = sbr.rel (%p260) target = $region40
      $region39: #{tpu_custom_call.1} parent=5 // pred_region
        %s264 = ssub.s32 %s18, 1
        %s265 = sand.u32 %s43, 1
        %s266 = scalar_lea.sflag [#allocation4], %s265
        %s267 = sand.u32 %s43, 1
        %s268 = smul.addr %s267, 8
        %s269 = scalar_lea.vmem [#allocation3], %s268
        // Predicated region
        $region41: #{tpu_custom_call.1} parent=39 // pred_check
          %p270 = pneg %p56
        $region42: #{tpu_custom_call.1} parent=39 // pred_check_branch
          %272 = sbr.rel (%p270) target = $region44
        $region43: #{tpu_custom_call.1} parent=39 // pred_region
          %273 = dma.done %s266, 128
        $region44: #{tpu_custom_call.1} parent=39 // pred_fallthru
          _
        // Predicated region
        $region45: #{tpu_custom_call.1} parent=39 // pred_check
          %p274 = pneg %p82
        $region46: #{tpu_custom_call.1} parent=39 // pred_check_branch
          %276 = sbr.rel (%p274) target = $region48
        $region47: #{tpu_custom_call.1} parent=39 // pred_region
          %277 = dma.done [#allocation7], 2048
        $region48: #{tpu_custom_call.1} parent=39 // pred_fallthru
          _
        // Predicated region
        $region49: #{tpu_custom_call.1} parent=39 // pred_check
          %p278 = pneg %p134
        $region50: #{tpu_custom_call.1} parent=39 // pred_check_branch
          %280 = sbr.rel (%p278) target = $region52
        $region51: #{tpu_custom_call.1} parent=39 // pred_region
          %281 = dma.done [#allocation7], 2048
        $region52: #{tpu_custom_call.1} parent=39 // pred_fallthru
          _
        %s282 = sand.u32 %s43, 1
        %s283 = scalar_lea.sflag [#allocation4], %s282
        %s284 = sand.u32 %s43, 1
        %s285 = smul.addr %s284, 8
        %s286 = scalar_lea.vmem [#allocation3], %s285
        %p287 = pneg %p56
        %p288 = pneg %p53
        %p289 = pneg %p82
        %p290 = pneg %p79
        %p291 = scmp.lt.s32.totalorder %s28, 0
        %s292 = scalar_select %p291, %s28, 0
        %s293 = scalar_lea.vmem %s2, %s292
        %p294 = pneg %p108
        %p295 = pneg %p105
        %p296 = pneg %p134
        %p297 = pneg %p131
        %p298 = pneg %p155
        %p299 = pneg %p152
        %p300 = pneg %p181
        %p301 = pneg %p178
        %s302 = sand.u32 %s168, 1
        %s303 = scalar_lea.sflag [#allocation5], %s302
        %s304 = sand.u32 %s168, 1
        %s305 = smul.addr %s304, 8
        %s306 = scalar_lea.vmem [#allocation9], %s305
        %p307 = scmp.lt.s32.totalorder %s28, 0
        %s308 = scalar_select %p307, %s28, 0
        %s309 = scalar_lea.vmem %s2, %s308
        %s310 = smul.u32 16, %s28
        %v311 = vld [vmem:[%s269] sm:$0xff]
        %v312 = vld [vmem:[#allocation6] sm:$0xff]
        %v313 = vld [vmem:[#allocation6 + $0x8] sm:$0xff]
        %v314 = vld [vmem:[#allocation6 + $0x10] sm:$0xff]
        %v315 = vld [vmem:[#allocation6 + $0x18] sm:$0xff]
        %v316 = vld [vmem:[#allocation6 + $0x20] sm:$0xff]
        %v317 = vld [vmem:[#allocation6 + $0x28] sm:$0xff]
        %v318 = vld [vmem:[#allocation6 + $0x30] sm:$0xff]
        %v319 = vld [vmem:[#allocation6 + $0x38] sm:$0xff]
        %v320 = vld [vmem:[#allocation6 + $0x40] sm:$0xff]
        %v321 = vld [vmem:[#allocation6 + $0x48] sm:$0xff]
        %v322 = vld [vmem:[#allocation6 + $0x50] sm:$0xff]
        %v323 = vld [vmem:[#allocation6 + $0x58] sm:$0xff]
        %v324 = vld [vmem:[#allocation6 + $0x60] sm:$0xff]
        %v325 = vld [vmem:[#allocation6 + $0x68] sm:$0xff]
        %v326 = vld [vmem:[#allocation6 + $0x70] sm:$0xff]
        %v327 = vld [vmem:[#allocation6 + $0x78] sm:$0xff]
        %v328 = vld [vmem:[%s309] sm:$0x1]
        %v330 = vlaneseq
        %v331 = vshrl.u32 %v330, 7
        %v332 = vsub.s32 0, %v331
        %v333 = vrot.slane %v328, %v332
        %335 = vmatprep.subr.mxu0 0.0
        %336 = vmatpush1.msra.mxu0 %v312
        %337 = vmatprep.subr.mxu0 0.0
        %338 = vmatpush1.msra.mxu0 %v313
        %339 = vmatprep.subr.mxu0 0.0
        %340 = vmatpush1.msra.mxu0 %v314
        %341 = vmatprep.subr.mxu0 0.0
        %342 = vmatpush1.msra.mxu0 %v315
        %343 = vmatprep.subr.mxu0 0.0
        %344 = vmatpush1.msra.mxu0 %v316
        %345 = vmatprep.subr.mxu0 0.0
        %346 = vmatpush1.msra.mxu0 %v317
        %347 = vmatprep.subr.mxu0 0.0
        %348 = vmatpush1.msra.mxu0 %v318
        %349 = vmatprep.subr.mxu0 0.0
        %350 = vmatpush1.msra.mxu0 %v319
        %351 = vmatprep.subr.mxu0 0.0
        %352 = vmatpush1.msra.mxu0 %v320
        %353 = vmatprep.subr.mxu0 0.0
        %354 = vmatpush1.msra.mxu0 %v321
        %355 = vmatprep.subr.mxu0 0.0
        %356 = vmatpush1.msra.mxu0 %v322
        %357 = vmatprep.subr.mxu0 0.0
        %358 = vmatpush1.msra.mxu0 %v323
        %359 = vmatprep.subr.mxu0 0.0
        %360 = vmatpush1.msra.mxu0 %v324
        %361 = vmatprep.subr.mxu0 0.0
        %362 = vmatpush1.msra.mxu0 %v325
        %363 = vmatprep.subr.mxu0 0.0
        %364 = vmatpush1.msra.mxu0 %v326
        %365 = vmatprep.subr.mxu0 0.0
        %366 = vmatpush1.msra.mxu0 %v327
        %367 = vmatprep.subr.mxu0 0.0
        %368 = vmatpush1.msra.mxu0 0.0
        %369 = vmatprep.subr.mxu0 0.0
        %370 = vmatpush1.msra.mxu0 0.0
        %371 = vmatprep.subr.mxu0 0.0
        %372 = vmatpush1.msra.mxu0 0.0
        %373 = vmatprep.subr.mxu0 0.0
        %374 = vmatpush1.msra.mxu0 0.0
        %375 = vmatprep.subr.mxu0 0.0
        %376 = vmatpush1.msra.mxu0 0.0
        %377 = vmatprep.subr.mxu0 0.0
        %378 = vmatpush1.msra.mxu0 0.0
        %379 = vmatprep.subr.mxu0 0.0
        %380 = vmatpush1.msra.mxu0 0.0
        %381 = vmatprep.subr.mxu0 0.0
        %382 = vmatpush1.msra.mxu0 0.0
        %383 = vmatprep.subr.mxu0 0.0
        %384 = vmatpush1.msra.mxu0 0.0
        %385 = vmatprep.subr.mxu0 0.0
        %386 = vmatpush1.msra.mxu0 0.0
        %387 = vmatprep.subr.mxu0 0.0
        %388 = vmatpush1.msra.mxu0 0.0
        %389 = vmatprep.subr.mxu0 0.0
        %390 = vmatpush1.msra.mxu0 0.0
        %391 = vmatprep.subr.mxu0 0.0
        %392 = vmatpush1.msra.mxu0 0.0
        %393 = vmatprep.subr.mxu0 0.0
        %394 = vmatpush1.msra.mxu0 0.0
        %395 = vmatprep.subr.mxu0 0.0
        %396 = vmatpush1.msra.mxu0 0.0
        %397 = vmatprep.subr.mxu0 0.0
        %398 = vmatpush1.msra.mxu0 0.0
        %399 = vmatprep.mubr.f32.mxu0 0.0
        %400 = vmatmul.mubr.f32.gmra.mrb[0].mxu0 %v311
        %v401 = vpop.f32.mrb[0].mxu0
        %v402 = vadd.f32 %v333, %v401
        %v403 = vpop.f32.mrb[0].mxu0
        %404 = vdwg.mxu0
        %v405 = vmax.f32 %v402, 0.0
        %v406 = vld [vmem:[#allocation8] sm:$0xff]
        %v407 = vld [vmem:[#allocation8 + $0x8] sm:$0xff]
        %v408 = vld [vmem:[#allocation8 + $0x10] sm:$0xff]
        %v409 = vld [vmem:[#allocation8 + $0x18] sm:$0xff]
        %v410 = vld [vmem:[#allocation8 + $0x20] sm:$0xff]
        %v411 = vld [vmem:[#allocation8 + $0x28] sm:$0xff]
        %v412 = vld [vmem:[#allocation8 + $0x30] sm:$0xff]
        %v413 = vld [vmem:[#allocation8 + $0x38] sm:$0xff]
        %v414 = vld [vmem:[#allocation8 + $0x40] sm:$0xff]
        %v415 = vld [vmem:[#allocation8 + $0x48] sm:$0xff]
        %v416 = vld [vmem:[#allocation8 + $0x50] sm:$0xff]
        %v417 = vld [vmem:[#allocation8 + $0x58] sm:$0xff]
        %v418 = vld [vmem:[#allocation8 + $0x60] sm:$0xff]
        %v419 = vld [vmem:[#allocation8 + $0x68] sm:$0xff]
        %v420 = vld [vmem:[#allocation8 + $0x70] sm:$0xff]
        %v421 = vld [vmem:[#allocation8 + $0x78] sm:$0xff]
        %422 = vmatprep.subr.mxu0 0.0
        %423 = vmatpush1.msra.mxu0 %v406
        %424 = vmatprep.subr.mxu0 0.0
        %425 = vmatpush1.msra.mxu0 %v407
        %426 = vmatprep.subr.mxu0 0.0
        %427 = vmatpush1.msra.mxu0 %v408
        %428 = vmatprep.subr.mxu0 0.0
        %429 = vmatpush1.msra.mxu0 %v409
        %430 = vmatprep.subr.mxu0 0.0
        %431 = vmatpush1.msra.mxu0 %v410
        %432 = vmatprep.subr.mxu0 0.0
        %433 = vmatpush1.msra.mxu0 %v411
        %434 = vmatprep.subr.mxu0 0.0
        %435 = vmatpush1.msra.mxu0 %v412
        %436 = vmatprep.subr.mxu0 0.0
        %437 = vmatpush1.msra.mxu0 %v413
        %438 = vmatprep.subr.mxu0 0.0
        %439 = vmatpush1.msra.mxu0 %v414
        %440 = vmatprep.subr.mxu0 0.0
        %441 = vmatpush1.msra.mxu0 %v415
        %442 = vmatprep.subr.mxu0 0.0
        %443 = vmatpush1.msra.mxu0 %v416
        %444 = vmatprep.subr.mxu0 0.0
        %445 = vmatpush1.msra.mxu0 %v417
        %446 = vmatprep.subr.mxu0 0.0
        %447 = vmatpush1.msra.mxu0 %v418
        %448 = vmatprep.subr.mxu0 0.0
        %449 = vmatpush1.msra.mxu0 %v419
        %450 = vmatprep.subr.mxu0 0.0
        %451 = vmatpush1.msra.mxu0 %v420
        %452 = vmatprep.subr.mxu0 0.0
        %453 = vmatpush1.msra.mxu0 %v421
        %454 = vmatprep.subr.mxu0 0.0
        %455 = vmatpush1.msra.mxu0 0.0
        %456 = vmatprep.subr.mxu0 0.0
        %457 = vmatpush1.msra.mxu0 0.0
        %458 = vmatprep.subr.mxu0 0.0
        %459 = vmatpush1.msra.mxu0 0.0
        %460 = vmatprep.subr.mxu0 0.0
        %461 = vmatpush1.msra.mxu0 0.0
        %462 = vmatprep.subr.mxu0 0.0
        %463 = vmatpush1.msra.mxu0 0.0
        %464 = vmatprep.subr.mxu0 0.0
        %465 = vmatpush1.msra.mxu0 0.0
        %466 = vmatprep.subr.mxu0 0.0
        %467 = vmatpush1.msra.mxu0 0.0
        %468 = vmatprep.subr.mxu0 0.0
        %469 = vmatpush1.msra.mxu0 0.0
        %470 = vmatprep.subr.mxu0 0.0
        %471 = vmatpush1.msra.mxu0 0.0
        %472 = vmatprep.subr.mxu0 0.0
        %473 = vmatpush1.msra.mxu0 0.0
        %474 = vmatprep.subr.mxu0 0.0
        %475 = vmatpush1.msra.mxu0 0.0
        %476 = vmatprep.subr.mxu0 0.0
        %477 = vmatpush1.msra.mxu0 0.0
        %478 = vmatprep.subr.mxu0 0.0
        %479 = vmatpush1.msra.mxu0 0.0
        %480 = vmatprep.subr.mxu0 0.0
        %481 = vmatpush1.msra.mxu0 0.0
        %482 = vmatprep.subr.mxu0 0.0
        %483 = vmatpush1.msra.mxu0 0.0
        %484 = vmatprep.subr.mxu0 0.0
        %485 = vmatpush1.msra.mxu0 0.0
        %486 = vmatprep.mubr.f32.mxu0 0.0
        %487 = vmatmul.mubr.f32.gmra.mrb[0].mxu0 %v405
        %v488 = vpop.f32.mrb[0].mxu0
        %v489 = vadd.f32 0.0, %v488
        %v490 = vpop.f32.mrb[0].mxu0
        %491 = vdwg.mxu0
        %p492 = scmp.eq.s32.totalorder %s28, 0
        // Predicated region
        $region53: #{tpu_custom_call.1} parent=39 // pred_check
          %p493 = pneg %p492
        $region54: #{tpu_custom_call.1} parent=39 // pred_check_branch
          %495 = sbr.rel (%p493) target = $region56
        $region55: #{tpu_custom_call.1} parent=39 // pred_region
          %496 = vst [vmem:[#allocation2] sm:$0xff] %v489
        $region56: #{tpu_custom_call.1} parent=39 // pred_fallthru
          _
        %p497 = scmp.ne.s32.totalorder %s28, 0
        // Predicated region
        $region57: #{tpu_custom_call.1} parent=39 // pred_check
          %p498 = pneg %p497
        $region58: #{tpu_custom_call.1} parent=39 // pred_check_branch
          %500 = sbr.rel (%p498) target = $region60
        $region59: #{tpu_custom_call.1} parent=39 // pred_region
          %v501 = vld [vmem:[#allocation2] sm:$0xff]
          %v502 = vadd.f32 %v501, %v489
          %503 = vst [vmem:[#allocation2] sm:$0xff] %v502
        $region60: #{tpu_custom_call.1} parent=39 // pred_fallthru
          _
        // Predicated region
        $region61: #{tpu_custom_call.1} parent=39 // pred_check
          %p504 = pneg %p492
        $region62: #{tpu_custom_call.1} parent=39 // pred_check_branch
          %506 = sbr.rel (%p504) target = $region64
        $region63: #{tpu_custom_call.1} parent=39 // pred_region
          %v507 = vld [vmem:[#allocation2] sm:$0xff]
          %v508 = vld [vmem:[%s4] sm:$0x1]
          %v510 = vlaneseq
          %v511 = vshrl.u32 %v510, 7
          %v512 = vsub.s32 0, %v511
          %v513 = vrot.slane %v508, %v512
          %v515 = vadd.f32 %v507, %v513
          %516 = vst [vmem:[%s306] sm:$0xff] %v515
        $region64: #{tpu_custom_call.1} parent=39 // pred_fallthru
          _
        %s517 = sand.u32 %s168, 1
        %s518 = scalar_lea.sflag [#allocation5], %s517
        %s519 = sand.u32 %s168, 1
        %s520 = smul.addr %s519, 8
        %s521 = scalar_lea.vmem [#allocation9], %s520
        // Predicated region
        $region65: #{tpu_custom_call.1} parent=39 // pred_check
          %p522 = pneg %p178
        $region66: #{tpu_custom_call.1} parent=39 // pred_check_branch
          %524 = sbr.rel (%p522) target = $region68
        $region67: #{tpu_custom_call.1} parent=39 // pred_region
          %s526 = ssub.s32 128, 128
          %527 = vsyncadd %s518, %s526
          %s528 = smul.addr %s27, 128
          %s529 = scalar_lea.hbm %s5, %s528
          %s531 = sshll.u32 %s521, 4
          %s532 = int_to_ptr.vmem [resolvable:$true] %s531
          %534 = dma.vmem_to_hbm [thread:$0]  %s532, 128, %s529, %s518
        $region68: #{tpu_custom_call.1} parent=39 // pred_fallthru
          _
      $region40: #{tpu_custom_call.1} parent=5 // pred_fallthru
        _
      %p535 = scmp.le.s32.totalorder 2, %s18
      // Predicated region
      $region69: #{tpu_custom_call.1} parent=5 // pred_check
        %p536 = pneg %p535
      $region70: #{tpu_custom_call.1} parent=5 // pred_check_branch
        %538 = sbr.rel (%p536) target = $region72
      $region71: #{tpu_custom_call.1} parent=5 // pred_region
        %s539 = ssub.s32 %s18, 2
        // Predicated region
        $region73: #{tpu_custom_call.1} parent=71 // pred_check
          %p540 = pneg %p184
        $region74: #{tpu_custom_call.1} parent=71 // pred_check_branch
          %542 = sbr.rel (%p540) target = $region76
        $region75: #{tpu_custom_call.1} parent=71 // pred_region
          %s543 = sand.u32 %s169, 1
          %s544 = scalar_lea.sflag [#allocation5], %s543
          %s545 = sand.u32 %s169, 1
          %s546 = smul.addr %s545, 8
          %s547 = scalar_lea.vmem [#allocation9], %s546
          %548 = dma.done %s544, 128
        $region76: #{tpu_custom_call.1} parent=71 // pred_fallthru
          _
      $region72: #{tpu_custom_call.1} parent=5 // pred_fallthru
        _
    $region6: #{tpu_custom_call.1} parent=1 // loop_footer
      %s22 = sadd.s32 1, %s18
    $region7: #{tpu_custom_call.1} parent=1 // loop_footer_branch
      %17 = sbr.rel target = $region3
    $region8: #{tpu_custom_call.1} parent=1 // loop_exit
      _
    %549 = vsyncpa [#allocation4], 1
    %s550 = scalar_lea.sflag [#allocation4], 1
    %551 = vsyncpa %s550, 1
    %552 = vsyncpa [#allocation7], 1
    %553 = vsyncpa [#allocation5], 1
    %s554 = scalar_lea.sflag [#allocation5], 1
    %555 = vsyncpa %s554, 1

</llo_original>
